<compile_context>
chip_gen: v5e
topology: v5e:2x2
jax: 0.10.0
libtpu: 0.0.40
codegen_flags: <defaults>
</compile_context>

<pallas_src>
import functools

import jax
import jax.numpy as jnp
from jax.experimental import pallas as pl
from jax.experimental.pallas import tpu as pltpu


def _smd_loss_kernel(pred_ref, gt_ref, sum_ref, cnt_ref, *, eps):
    """pred_ref: (B, 5, TM, 128), gt_ref: (B, 1, TM, 128) input tiles.
    sum_ref / cnt_ref: (B, 8, 128) resident accumulator slabs (one per core slice)."""
    i = pl.program_id(1)  # inner ("arbitrary") axis over row tiles

    @pl.when(i == 0)
    def _():
        sum_ref[...] = jnp.zeros_like(sum_ref)
        cnt_ref[...] = jnp.zeros_like(cnt_ref)

    gt = gt_ref[:, 0, :, :].astype(jnp.float32)      # (B, TM, 128) dense tiles
    mu0 = pred_ref[:, 0, :, :].astype(jnp.float32)
    mu1 = pred_ref[:, 1, :, :].astype(jnp.float32)
    b0 = pred_ref[:, 2, :, :].astype(jnp.float32) + eps
    b1 = pred_ref[:, 3, :, :].astype(jnp.float32) + eps
    pi0 = pred_ref[:, 4, :, :].astype(jnp.float32)

    # compute_probs: Laplace pdf = exp(-|x - mu| / b) / (2 b), mixed by pi.
    # approx reciprocal runs on the otherwise-idle EUP slot (free in a mem-bound
    # kernel); 1/b is reused for the exponent and the normalizer.
    inv_b0 = pl.reciprocal(b0, approx=True)
    inv_b1 = pl.reciprocal(b1, approx=True)
    p0 = jnp.exp(-jnp.abs(gt - mu0) * inv_b0) * (0.5 * inv_b0)
    p1 = jnp.exp(-jnp.abs(gt - mu1) * inv_b1) * (0.5 * inv_b1)
    p_gt = pi0 * p0 + (1.0 - pi0) * p1

    # raw_loss: negative log-likelihood.
    loss = -jnp.log(p_gt)

    # loss_mask = ~isnan(p_gt) & (loss != inf)
    mask = jnp.logical_not(jnp.isnan(p_gt)) & (loss != jnp.inf)

    # In-tile reduction over the row axis into fixed (B, 8, 128) slabs.  The reshape
    # splits the sublane axis at multiples of 8 (tile-aligned, no relayout); the sum
    # over axis=1 is cheap VALU adds — plenty of slack in an HBM-bound kernel.
    b, tm, _ = loss.shape
    masked = jnp.where(mask, loss, 0.0).reshape(b, tm // 8, 8, 128)
    counts = mask.astype(jnp.float32).reshape(b, tm // 8, 8, 128)
    sum_ref[...] += masked.sum(axis=1)
    cnt_ref[...] += counts.sum(axis=1)


def _tpu_policy():
    """Return (usable VMEM budget in bytes, TensorCores per chip) — generation aware."""
    kind = ""
    try:
        kind = (jax.devices()[0].device_kind or "").lower()
    except Exception:
        pass
    if "v7" in kind:
        # v7x: 64 MiB VMEM per TensorCore -> leave headroom; 2 TCs per chip.
        return 48 << 20, 2
    # v5e / v6e: 128 MiB VMEM, single TensorCore.
    return 96 << 20, 1


def _choose_partition(rows, bytes_per_row, ncore, in_budget, row_align):
    """Pick (ncore, tm, tiles_per_core, padded_rows) for the row axis (rows = N/128).

    tm is a multiple of row_align (8 for f32, 16 for bf16).  Rows are padded up to
    ncore * tiles_per_core * tm in the wrapper (padding is masked out via NaN gt).
    """
    cap = in_budget // (2 * bytes_per_row)               # rows per double-buffered block
    cap = max(row_align, min(512, (cap // row_align) * row_align))
    if ncore > 1 and rows < 4 * ncore * row_align:
        ncore = 1                                         # tiny problem: don't split cores
    rows_per_core = pl.cdiv(rows, ncore)
    tm = min(cap, pl.cdiv(rows_per_core, row_align) * row_align)
    tiles_per_core = pl.cdiv(rows_per_core, tm)
    padded_rows = ncore * tiles_per_core * tm
    return ncore, tm, tiles_per_core, padded_rows


def smd_loss(pred, gt, eps):
    """pred: (B, 5, N) f32/bf16, gt: (B, 1, N) f32/bf16, eps: Python scalar constant."""
    B, C, N = pred.shape
    assert C == 5, "pred must carry [mu0, mu1, sigma0, sigma1, pi0]"
    assert gt.shape == (B, 1, N)

    def _norm(x):
        # Keep f32 / bf16 as-is (bf16 halves HBM traffic); anything else -> f32.
        return x if x.dtype in (jnp.float32, jnp.bfloat16) else x.astype(jnp.float32)

    pred = _norm(pred)
    gt = _norm(gt)
    row_align = 16 if (pred.dtype == jnp.bfloat16 or gt.dtype == jnp.bfloat16) else 8

    usable_vmem, ncore = _tpu_policy()
    rows = pl.cdiv(N, 128)
    bytes_per_row = (5 * pred.dtype.itemsize + gt.dtype.itemsize) * B * 128
    ncore, tm, tiles_per_core, padded_rows = _choose_partition(
        rows, bytes_per_row, ncore, usable_vmem - (6 << 20), row_align)

    n_pad = padded_rows * 128
    if n_pad != N:
        # Pad gt with NaN so p_gt is NaN on the padding and the loss mask drops it.
        pred = jnp.pad(pred, ((0, 0), (0, 0), (0, n_pad - N)))
        gt = jnp.pad(gt, ((0, 0), (0, 0), (0, n_pad - N)),
                     constant_values=float("nan"))
    pred = pred.reshape(B, 5, padded_rows, 128)   # contiguous reshape -> free
    gt = gt.reshape(B, 1, padded_rows, 128)

    # Accurate VMEM ask: double-buffered input blocks + resident accumulator slabs
    # + a little compiler scratch; capped generation-aware (48 MiB on v7x).
    pred_blk = B * 5 * tm * 128 * pred.dtype.itemsize
    gt_blk = B * 1 * tm * 128 * gt.dtype.itemsize
    acc_blk = 2 * B * 8 * 128 * 4
    vmem_limit = int(min(max(2 * (pred_blk + gt_blk) + acc_blk + (2 << 20),
                             16 << 20), usable_vmem))

    kernel = functools.partial(_smd_loss_kernel, eps=float(eps))

    sums, cnts = pl.pallas_call(
        kernel,
        out_shape=(
            jax.ShapeDtypeStruct((ncore, B, 8, 128), jnp.float32),
            jax.ShapeDtypeStruct((ncore, B, 8, 128), jnp.float32),
        ),
        grid_spec=pltpu.PrefetchScalarGridSpec(
            num_scalar_prefetch=0,
            grid=(ncore, tiles_per_core),
            in_specs=[
                pl.BlockSpec((B, 5, tm, 128),
                             lambda c, i: (0, 0, c * tiles_per_core + i, 0)),
                pl.BlockSpec((B, 1, tm, 128),
                             lambda c, i: (0, 0, c * tiles_per_core + i, 0)),
            ],
            out_specs=(
                pl.BlockSpec((None, B, 8, 128), lambda c, i: (c, 0, 0, 0)),
                pl.BlockSpec((None, B, 8, 128), lambda c, i: (c, 0, 0, 0)),
            ),
        ),
        compiler_params=pltpu.CompilerParams(
            dimension_semantics=("parallel", "arbitrary"),
            vmem_limit_bytes=vmem_limit),
    )(pred, gt)

    total = jnp.sum(sums)
    count = jnp.sum(cnts.astype(jnp.int32))   # per-element counts are small ints -> exact
    # NOTE: if every element is masked out this is 0/0 -> nan, matching torch's
    # mean over an empty selection.
    return total / count.astype(jnp.float32)


def _smd_loss_ref(pred, gt, eps):
    """Pure-JAX reference mirroring the PyTorch forward."""
    pred = pred.astype(jnp.float32)
    gt = gt.astype(jnp.float32)
    mu0, mu1 = pred[:, 0:1], pred[:, 1:2]
    b0, b1 = pred[:, 2:3] + eps, pred[:, 3:4] + eps
    pi0 = pred[:, 4:5]
    p0 = jnp.exp(-jnp.abs(gt - mu0) / b0) / (2.0 * b0)
    p1 = jnp.exp(-jnp.abs(gt - mu1) / b1) / (2.0 * b1)
    p_gt = pi0 * p0 + (1.0 - pi0) * p1
    loss = -jnp.log(p_gt)
    mask = jnp.logical_not(jnp.isnan(p_gt)) & (loss != jnp.inf)
    return jnp.sum(jnp.where(mask, loss, 0.0)) / jnp.sum(mask)


if __name__ == "__main__":
    eps = 0.01

    def make_inputs(key, B, N):
        k_mu, k_sig, k_pi, k_gt = jax.random.split(key, 4)
        mu = jax.random.normal(k_mu, (B, 2, N), dtype=jnp.float32) * 2.0
        sig = jnp.abs(jax.random.normal(k_sig, (B, 2, N), dtype=jnp.float32)) * 0.5 + 0.1
        pi0 = jax.nn.sigmoid(jax.random.normal(k_pi, (B, 1, N), dtype=jnp.float32))
        pred = jnp.concatenate([mu, sig, pi0], axis=1)       # (B, 5, N)
        gt = jax.random.normal(k_gt, (B, 1, N), dtype=jnp.float32) * 2.0
        return pred, gt

    key = jax.random.PRNGKey(0)
    k_small, k_odd, k_large = jax.random.split(key, 3)

    # Small shape consistent with the module (B=2, H=W=16 -> N=256).
    pred_s, gt_s = make_inputs(k_small, 2, 16 * 16)
    out_s = jax.block_until_ready(smd_loss(pred_s, gt_s, eps))
    ref_s = jax.block_until_ready(_smd_loss_ref(pred_s, gt_s, eps))
    assert jnp.allclose(out_s, ref_s, rtol=5e-4, atol=1e-5), (out_s, ref_s)

    # Non-multiple-of-128 spatial size exercises the NaN-padding path.
    pred_o, gt_o = make_inputs(k_odd, 2, 1000)
    out_o = jax.block_until_ready(smd_loss(pred_o, gt_o, eps))
    ref_o = jax.block_until_ready(_smd_loss_ref(pred_o, gt_o, eps))
    assert jnp.allclose(out_o, ref_o, rtol=5e-4, atol=1e-5), (out_o, ref_o)

    # Larger shape with several row tiles (N = 64*128).
    pred_l, gt_l = make_inputs(k_large, 2, 64 * 128)
    out_l = jax.block_until_ready(smd_loss(pred_l, gt_l, eps))
    ref_l = jax.block_until_ready(_smd_loss_ref(pred_l, gt_l, eps))
    assert jnp.allclose(out_l, ref_l, rtol=5e-4, atol=1e-5), (out_l, ref_l)

    # bf16 inputs go straight through the kernel (halves HBM traffic, 16-row tiles).
    pred_b, gt_b = pred_l.astype(jnp.bfloat16), gt_l.astype(jnp.bfloat16)
    out_b = jax.block_until_ready(smd_loss(pred_b, gt_b, eps))
    ref_b = jax.block_until_ready(_smd_loss_ref(pred_b, gt_b, eps))
    assert jnp.allclose(out_b, ref_b, rtol=5e-3, atol=1e-4), (out_b, ref_b)

    print("KERNEL_OK")
</pallas_src>

<mosaic_0001>
module attributes {stable_mosaic.version = 11 : i64} {
  func.func @_smd_loss_kernel(%arg0: i32, %arg1: i32, %arg2: memref<2x5x8x128xf32, #tpu.memory_space<vmem>>, %arg3: memref<2x1x8x128xf32, #tpu.memory_space<vmem>>, %arg4: memref<1x2x8x128xf32, #tpu.memory_space<vmem>>, %arg5: memref<1x2x8x128xf32, #tpu.memory_space<vmem>>) attributes {dimension_semantics = [#tpu.dimension_semantics<parallel>, #tpu.dimension_semantics<arbitrary>], iteration_bounds = array<i64: 1, 1>, scalar_prefetch = 0 : i64, scratch_operands = 0 : i64, tpu.core_type = #tpu.core_type<tc>, window_params = [{transform_indices = @transform_0, window_bounds = array<i64: 2, 5, 8, 128>}, {transform_indices = @transform_1, window_bounds = array<i64: 2, 1, 8, 128>}, {transform_indices = @transform_2, window_bounds = array<i64: 1, 2, 8, 128>}, {transform_indices = @transform_3, window_bounds = array<i64: 1, 2, 8, 128>}]} {
    %c0_i32 = arith.constant 0 : i32
    %0 = arith.cmpi eq, %arg1, %c0_i32 : i32
    %1 = arith.extui %0 : i1 to i32
    %c0_i32_0 = arith.constant 0 : i32
    %2 = arith.cmpi ne, %1, %c0_i32_0 : i32
    scf.if %2 {
      %cst_48 = arith.constant 0.000000e+00 : f32
      %72 = vector.broadcast %cst_48 : f32 to vector<2x8x128xf32>
      %c0_49 = arith.constant 0 : index
      %c0_50 = arith.constant 0 : index
      %c0_51 = arith.constant 0 : index
      %c0_52 = arith.constant 0 : index
      %73 = vector.load %arg4[%c0_49, %c0_50, %c0_51, %c0_52] : memref<1x2x8x128xf32, #tpu.memory_space<vmem>>, vector<1x2x8x128xf32>
      %74 = vector.shape_cast %73 : vector<1x2x8x128xf32> to vector<2x8x128xf32>
      %75 = vector.shape_cast %72 : vector<2x8x128xf32> to vector<1x2x8x128xf32>
      tpu.vector_store %arg4[%c0_49, %c0_50, %c0_51, %c0_52], %75 {strides = array<i32>} : memref<1x2x8x128xf32, #tpu.memory_space<vmem>>, vector<1x2x8x128xf32>,
      %cst_53 = arith.constant 0.000000e+00 : f32
      %76 = vector.broadcast %cst_53 : f32 to vector<2x8x128xf32>
      %c0_54 = arith.constant 0 : index
      %c0_55 = arith.constant 0 : index
      %c0_56 = arith.constant 0 : index
      %c0_57 = arith.constant 0 : index
      %77 = vector.load %arg5[%c0_54, %c0_55, %c0_56, %c0_57] : memref<1x2x8x128xf32, #tpu.memory_space<vmem>>, vector<1x2x8x128xf32>
      %78 = vector.shape_cast %77 : vector<1x2x8x128xf32> to vector<2x8x128xf32>
      %79 = vector.shape_cast %76 : vector<2x8x128xf32> to vector<1x2x8x128xf32>
      tpu.vector_store %arg5[%c0_54, %c0_55, %c0_56, %c0_57], %79 {strides = array<i32>} : memref<1x2x8x128xf32, #tpu.memory_space<vmem>>, vector<1x2x8x128xf32>,
    } else {
    }
    %c0 = arith.constant 0 : index
    %c0_1 = arith.constant 0 : index
    %c0_2 = arith.constant 0 : index
    %c0_3 = arith.constant 0 : index
    %3 = vector.load %arg3[%c0, %c0_1, %c0_2, %c0_3] : memref<2x1x8x128xf32, #tpu.memory_space<vmem>>, vector<2x1x8x128xf32>
    %4 = vector.shape_cast %3 : vector<2x1x8x128xf32> to vector<2x8x128xf32>
    %c0_4 = arith.constant 0 : index
    %c0_5 = arith.constant 0 : index
    %c0_6 = arith.constant 0 : index
    %c0_7 = arith.constant 0 : index
    %5 = vector.load %arg2[%c0_4, %c0_5, %c0_6, %c0_7] : memref<2x5x8x128xf32, #tpu.memory_space<vmem>>, vector<2x1x8x128xf32>
    %6 = vector.shape_cast %5 : vector<2x1x8x128xf32> to vector<2x8x128xf32>
    %c0_8 = arith.constant 0 : index
    %c1 = arith.constant 1 : index
    %c0_9 = arith.constant 0 : index
    %c0_10 = arith.constant 0 : index
    %7 = vector.load %arg2[%c0_8, %c1, %c0_9, %c0_10] : memref<2x5x8x128xf32, #tpu.memory_space<vmem>>, vector<2x1x8x128xf32>
    %8 = vector.shape_cast %7 : vector<2x1x8x128xf32> to vector<2x8x128xf32>
    %c0_11 = arith.constant 0 : index
    %c2 = arith.constant 2 : index
    %c0_12 = arith.constant 0 : index
    %c0_13 = arith.constant 0 : index
    %9 = vector.load %arg2[%c0_11, %c2, %c0_12, %c0_13] : memref<2x5x8x128xf32, #tpu.memory_space<vmem>>, vector<2x1x8x128xf32>
    %10 = vector.shape_cast %9 : vector<2x1x8x128xf32> to vector<2x8x128xf32>
    %cst = arith.constant 0.00999999977 : f32
    %11 = vector.broadcast %cst : f32 to vector<2x8x128xf32>
    %12 = arith.addf %10, %11 : vector<2x8x128xf32>
    %c0_14 = arith.constant 0 : index
    %c3 = arith.constant 3 : index
    %c0_15 = arith.constant 0 : index
    %c0_16 = arith.constant 0 : index
    %13 = vector.load %arg2[%c0_14, %c3, %c0_15, %c0_16] : memref<2x5x8x128xf32, #tpu.memory_space<vmem>>, vector<2x1x8x128xf32>
    %14 = vector.shape_cast %13 : vector<2x1x8x128xf32> to vector<2x8x128xf32>
    %cst_17 = arith.constant 0.00999999977 : f32
    %15 = vector.broadcast %cst_17 : f32 to vector<2x8x128xf32>
    %16 = arith.addf %14, %15 : vector<2x8x128xf32>
    %c0_18 = arith.constant 0 : index
    %c4 = arith.constant 4 : index
    %c0_19 = arith.constant 0 : index
    %c0_20 = arith.constant 0 : index
    %17 = vector.load %arg2[%c0_18, %c4, %c0_19, %c0_20] : memref<2x5x8x128xf32, #tpu.memory_space<vmem>>, vector<2x1x8x128xf32>
    %18 = vector.shape_cast %17 : vector<2x1x8x128xf32> to vector<2x8x128xf32>
    %19 = tpu.reciprocal %12 {approx = true} : vector<2x8x128xf32> -> vector<2x8x128xf32>
    %20 = tpu.reciprocal %16 {approx = true} : vector<2x8x128xf32> -> vector<2x8x128xf32>
    %21 = arith.subf %4, %6 : vector<2x8x128xf32>
    %22 = math.absf %21 : vector<2x8x128xf32>
    %cst_21 = arith.constant 0.000000e+00 : f32
    %23 = vector.broadcast %cst_21 : f32 to vector<2x8x128xf32>
    %24 = arith.subf %23, %22 : vector<2x8x128xf32>
    %25 = arith.mulf %24, %19 : vector<2x8x128xf32>
    %26 = math.exp %25 : vector<2x8x128xf32>
    %cst_22 = arith.constant 5.000000e-01 : f32
    %27 = vector.broadcast %cst_22 : f32 to vector<2x8x128xf32>
    %28 = arith.mulf %27, %19 : vector<2x8x128xf32>
    %29 = arith.mulf %26, %28 : vector<2x8x128xf32>
    %30 = arith.subf %4, %8 : vector<2x8x128xf32>
    %31 = math.absf %30 : vector<2x8x128xf32>
    %cst_23 = arith.constant 0.000000e+00 : f32
    %32 = vector.broadcast %cst_23 : f32 to vector<2x8x128xf32>
    %33 = arith.subf %32, %31 : vector<2x8x128xf32>
    %34 = arith.mulf %33, %20 : vector<2x8x128xf32>
    %35 = math.exp %34 : vector<2x8x128xf32>
    %cst_24 = arith.constant 5.000000e-01 : f32
    %36 = vector.broadcast %cst_24 : f32 to vector<2x8x128xf32>
    %37 = arith.mulf %36, %20 : vector<2x8x128xf32>
    %38 = arith.mulf %35, %37 : vector<2x8x128xf32>
    %39 = arith.mulf %18, %29 : vector<2x8x128xf32>
    %cst_25 = arith.constant 1.000000e+00 : f32
    %40 = vector.broadcast %cst_25 : f32 to vector<2x8x128xf32>
    %41 = arith.subf %40, %18 : vector<2x8x128xf32>
    %42 = arith.mulf %41, %38 : vector<2x8x128xf32>
    %43 = arith.addf %39, %42 : vector<2x8x128xf32>
    %44 = math.log %43 : vector<2x8x128xf32>
    %cst_26 = arith.constant 0.000000e+00 : f32
    %45 = vector.broadcast %cst_26 : f32 to vector<2x8x128xf32>
    %46 = arith.subf %45, %44 : vector<2x8x128xf32>
    %47 = arith.cmpf one, %43, %43 : vector<2x8x128xf32>
    %cst_27 = arith.constant dense<true> : vector<2x8x128xi1>
    %48 = arith.xori %47, %cst_27 : vector<2x8x128xi1>
    %cst_28 = arith.constant 0x7F800000 : f32
    %49 = vector.broadcast %cst_28 : f32 to vector<2x8x128xf32>
    %50 = arith.cmpf one, %46, %49 : vector<2x8x128xf32>
    %51 = arith.andi %48, %50 : vector<2x8x128xi1>
    %cst_29 = arith.constant 0.000000e+00 : f32
    %52 = vector.broadcast %cst_29 : f32 to vector<2x8x128xf32>
    %53 = arith.select %51, %46, %52 : vector<2x8x128xi1>, vector<2x8x128xf32>
    %54 = vector.shape_cast %53 : vector<2x8x128xf32> to vector<2x1x8x128xf32>
    %55 = arith.extui %51 : vector<2x8x128xi1> to vector<2x8x128xi32>
    %56 = arith.sitofp %55 : vector<2x8x128xi32> to vector<2x8x128xf32>
    %57 = vector.shape_cast %56 : vector<2x8x128xf32> to vector<2x1x8x128xf32>
    %c0_30 = arith.constant 0 : index
    %c0_31 = arith.constant 0 : index
    %c0_32 = arith.constant 0 : index
    %c0_33 = arith.constant 0 : index
    %58 = vector.load %arg4[%c0_30, %c0_31, %c0_32, %c0_33] : memref<1x2x8x128xf32, #tpu.memory_space<vmem>>, vector<1x2x8x128xf32>
    %59 = vector.shape_cast %58 : vector<1x2x8x128xf32> to vector<2x8x128xf32>
    %cst_34 = arith.constant dense<0.000000e+00> : vector<2x8x128xf32>
    %60 = vector.multi_reduction <add>, %54, %cst_34 [1] : vector<2x1x8x128xf32> to vector<2x8x128xf32>
    %61 = arith.addf %59, %60 : vector<2x8x128xf32>
    %c0_35 = arith.constant 0 : index
    %c0_36 = arith.constant 0 : index
    %c0_37 = arith.constant 0 : index
    %c0_38 = arith.constant 0 : index
    %62 = vector.load %arg4[%c0_35, %c0_36, %c0_37, %c0_38] : memref<1x2x8x128xf32, #tpu.memory_space<vmem>>, vector<1x2x8x128xf32>
    %63 = vector.shape_cast %62 : vector<1x2x8x128xf32> to vector<2x8x128xf32>
    %64 = vector.shape_cast %61 : vector<2x8x128xf32> to vector<1x2x8x128xf32>
    tpu.vector_store %arg4[%c0_35, %c0_36, %c0_37, %c0_38], %64 {strides = array<i32>} : memref<1x2x8x128xf32, #tpu.memory_space<vmem>>, vector<1x2x8x128xf32>,
    %c0_39 = arith.constant 0 : index
    %c0_40 = arith.constant 0 : index
    %c0_41 = arith.constant 0 : index
    %c0_42 = arith.constant 0 : index
    %65 = vector.load %arg5[%c0_39, %c0_40, %c0_41, %c0_42] : memref<1x2x8x128xf32, #tpu.memory_space<vmem>>, vector<1x2x8x128xf32>
    %66 = vector.shape_cast %65 : vector<1x2x8x128xf32> to vector<2x8x128xf32>
    %cst_43 = arith.constant dense<0.000000e+00> : vector<2x8x128xf32>
    %67 = vector.multi_reduction <add>, %57, %cst_43 [1] : vector<2x1x8x128xf32> to vector<2x8x128xf32>
    %68 = arith.addf %66, %67 : vector<2x8x128xf32>
    %c0_44 = arith.constant 0 : index
    %c0_45 = arith.constant 0 : index
    %c0_46 = arith.constant 0 : index
    %c0_47 = arith.constant 0 : index
    %69 = vector.load %arg5[%c0_44, %c0_45, %c0_46, %c0_47] : memref<1x2x8x128xf32, #tpu.memory_space<vmem>>, vector<1x2x8x128xf32>
    %70 = vector.shape_cast %69 : vector<1x2x8x128xf32> to vector<2x8x128xf32>
    %71 = vector.shape_cast %68 : vector<2x8x128xf32> to vector<1x2x8x128xf32>
    tpu.vector_store %arg5[%c0_44, %c0_45, %c0_46, %c0_47], %71 {strides = array<i32>} : memref<1x2x8x128xf32, #tpu.memory_space<vmem>>, vector<1x2x8x128xf32>,
    return
  }
  func.func @transform_0(%arg0: i32, %arg1: i32) -> (i32, i32, i32, i32) {
    %c1_i32 = arith.constant 1 : i32
    %0 = arith.muli %arg0, %c1_i32 : i32
    %1 = arith.addi %0, %arg1 : i32
    %c0_i32 = arith.constant 0 : i32
    %c0_i32_0 = arith.constant 0 : i32
    %c0_i32_1 = arith.constant 0 : i32
    %c0_i32_2 = arith.constant 0 : i32
    return %c0_i32, %c0_i32_0, %1, %c0_i32_1 : i32, i32, i32, i32
  }
  func.func @transform_1(%arg0: i32, %arg1: i32) -> (i32, i32, i32, i32) {
    %c1_i32 = arith.constant 1 : i32
    %0 = arith.muli %arg0, %c1_i32 : i32
    %1 = arith.addi %0, %arg1 : i32
    %c0_i32 = arith.constant 0 : i32
    %c0_i32_0 = arith.constant 0 : i32
    %c0_i32_1 = arith.constant 0 : i32
    %c0_i32_2 = arith.constant 0 : i32
    return %c0_i32, %c0_i32_0, %1, %c0_i32_1 : i32, i32, i32, i32
  }
  func.func @transform_2(%arg0: i32, %arg1: i32) -> (i32, i32, i32, i32) {
    %c0_i32 = arith.constant 0 : i32
    %c0_i32_0 = arith.constant 0 : i32
    %c0_i32_1 = arith.constant 0 : i32
    %c0_i32_2 = arith.constant 0 : i32
    return %arg0, %c0_i32, %c0_i32_0, %c0_i32_1 : i32, i32, i32, i32
  }
  func.func @transform_3(%arg0: i32, %arg1: i32) -> (i32, i32, i32, i32) {
    %c0_i32 = arith.constant 0 : i32
    %c0_i32_0 = arith.constant 0 : i32
    %c0_i32_1 = arith.constant 0 : i32
    %c0_i32_2 = arith.constant 0 : i32
    return %arg0, %c0_i32, %c0_i32_0, %c0_i32_1 : i32, i32, i32, i32
  }
}

</mosaic_0001>

<llo_original>
// kernel: tpu_custom_call.1
$region0: #{tpu_custom_call.1}
  #allocation0 [shape = 'u32[]', space=smem, size = 0x4, offset = 0x4, fixed_abs, tag = 'smem constant byte address 0x4 - core index']
  #allocation1 [shape = 'u32[72,128]{1,0:T(1,128)}', space=vmem, size = 0x9000, scoped, tag = 'internal scratch']
  %s0 = inlined_call_operand.hbm [shape: f32[2,5,8,128], index: 0, kind: input, shape index: {}]
  %s1 = inlined_call_operand.hbm [shape: f32[2,1,8,128], index: 1, kind: input, shape index: {}]
  %s2 = inlined_call_operand.hbm [shape: f32[1,2,8,128], index: 2, kind: output, shape index: {0}]
  %s3 = inlined_call_operand.hbm [shape: f32[1,2,8,128], index: 3, kind: output, shape index: {1}]
  %4 = xla_tuple %s2, %s3
  %s5 = sld [smem:[#allocation0]]
  $region38: #{tpu_custom_call.1} parent=0
    _
  %s7 = ssub.s32 1, %s5
  %s8 = scalar_select 0, %s7, %s5
  $region1: #{tpu_custom_call.1} parent=0
    #allocation2 [shape = 'u8[40960]{0}', space=vmem, size = 0xa000, scoped, tag = 'input window, operand 0, single buffered']
    #allocation3 [shape = 's32[1]{0}', space=sflag, size = 0x4, scoped, tag = 'scoped memory for tpu_custom_call.1']
    #allocation4 [shape = 's32[1]{0}', space=sflag, size = 0x4, scoped, tag = 'scoped memory for tpu_custom_call.1']
    #allocation5 [shape = 'u8[8192]{0}', space=vmem, size = 0x2000, scoped, tag = 'input window, operand 1, single buffered']
    #allocation6 [shape = 's32[1]{0}', space=sflag, size = 0x4, scoped, tag = 'scoped memory for tpu_custom_call.1']
    #allocation7 [shape = 'u8[8192]{0}', space=vmem, size = 0x2000, scoped, tag = 'output window, operand 0, single buffered']
    #allocation8 [shape = 'u8[8192]{0}', space=vmem, size = 0x2000, scoped, tag = 'output window, operand 1, single buffered']
    #allocation9 [shape = 's32[1]{0}', space=sflag, size = 0x4, scoped, tag = 'scoped memory for tpu_custom_call.1']
    %9 = vsyncpa [#allocation3], 0
    %10 = vsyncpa [#allocation6], 0
    %11 = vsyncpa [#allocation4], 0
    %12 = vsyncpa [#allocation9], 0
    // Predicated region
    $region2: #{tpu_custom_call.1} parent=1 // pred_check
      _
    $region3: #{tpu_custom_call.1} parent=1 // pred_check_branch
      %14 = sbr.rel (0) target = $region5
    $region4: #{tpu_custom_call.1} parent=1 // pred_region
      %s15 = sadd.s32 0, 0
      %17 = vsyncadd [#allocation3], 0
      %s18 = smul.addr %s15, 8
      %s19 = scalar_lea.hbm %s0, %s18
      %s20 = sshll.u32 %s19, 4
      %s21 = int_to_ptr.hbm [resolvable:$true] %s20
      %s22 = sshll.u32 [#allocation2], 4
      %s23 = int_to_ptr.vmem [resolvable:$true] %s22
      %28 = dma.hbm_to_vmem [thread:$0]  %s21, 1280, %s23, [#allocation3], 128, 128, 8
    $region5: #{tpu_custom_call.1} parent=1 // pred_fallthru
      _
    // Predicated region
    $region6: #{tpu_custom_call.1} parent=1 // pred_check
      _
    $region7: #{tpu_custom_call.1} parent=1 // pred_check_branch
      %30 = sbr.rel (0) target = $region9
    $region8: #{tpu_custom_call.1} parent=1 // pred_region
      %s31 = sadd.s32 0, 0
      %33 = vsyncadd [#allocation6], 0
      %s34 = smul.addr %s31, 8
      %s35 = scalar_lea.hbm %s1, %s34
      %s36 = sshll.u32 %s35, 4
      %s37 = int_to_ptr.hbm [resolvable:$true] %s36
      %s38 = sshll.u32 [#allocation5], 4
      %s39 = int_to_ptr.vmem [resolvable:$true] %s38
      %44 = dma.hbm_to_vmem [thread:$0]  %s37, 256, %s39, [#allocation6], 128, 128, 8
    $region9: #{tpu_custom_call.1} parent=1 // pred_fallthru
      _
    // Predicated region
    $region10: #{tpu_custom_call.1} parent=1 // pred_check
      _
    $region11: #{tpu_custom_call.1} parent=1 // pred_check_branch
      %46 = sbr.rel (0) target = $region13
    $region12: #{tpu_custom_call.1} parent=1 // pred_region
      %48 = dma.done [#allocation3], 1280
    $region13: #{tpu_custom_call.1} parent=1 // pred_fallthru
      _
    // Predicated region
    $region14: #{tpu_custom_call.1} parent=1 // pred_check
      _
    $region15: #{tpu_custom_call.1} parent=1 // pred_check_branch
      %50 = sbr.rel (0) target = $region17
    $region16: #{tpu_custom_call.1} parent=1 // pred_region
      %52 = dma.done [#allocation6], 256
    $region17: #{tpu_custom_call.1} parent=1 // pred_fallthru
      _
    %s53 = sadd.s32 0, 0
    %s54 = sadd.s32 0, 0
    %p55 = scmp.eq.s32.totalorder 0, 0
    // Predicated region
    $region18: #{tpu_custom_call.1} parent=1 // pred_check
      %p56 = pneg %p55
    $region19: #{tpu_custom_call.1} parent=1 // pred_check_branch
      %58 = sbr.rel (%p56) target = $region21
    $region20: #{tpu_custom_call.1} parent=1 // pred_region
      %59 = vst [vmem:[#allocation7] sm:$0xff] 0.0
      %60 = vst [vmem:[#allocation7 + $0x8] sm:$0xff] 0.0
      %61 = vst [vmem:[#allocation8] sm:$0xff] 0.0
      %62 = vst [vmem:[#allocation8 + $0x8] sm:$0xff] 0.0
    $region21: #{tpu_custom_call.1} parent=1 // pred_fallthru
      _
    %v63 = vld [vmem:[#allocation5] sm:$0xff]
    %v64 = vld [vmem:[#allocation5 + $0x8] sm:$0xff]
    %v65 = vld [vmem:[#allocation2] sm:$0xff]
    %v66 = vld [vmem:[#allocation2 + $0x28] sm:$0xff]
    %s67 = scalar_lea.vmem [#allocation2], 8
    %v68 = vld [vmem:[%s67] sm:$0xff]
    %v69 = vld [vmem:[%s67 + $0x28] sm:$0xff]
    %s70 = scalar_lea.vmem [#allocation2], 16
    %v71 = vld [vmem:[%s70] sm:$0xff]
    %v72 = vld [vmem:[%s70 + $0x28] sm:$0xff]
    %v73 = vadd.f32 %v71, 0.01
    %v74 = vadd.f32 %v72, 0.01
    %s75 = scalar_lea.vmem [#allocation2], 24
    %v76 = vld [vmem:[%s75] sm:$0xff]
    %v77 = vld [vmem:[%s75 + $0x28] sm:$0xff]
    %v78 = vadd.f32 %v76, 0.01
    %v79 = vadd.f32 %v77, 0.01
    %s80 = scalar_lea.vmem [#allocation2], 32
    %v81 = vld [vmem:[%s80] sm:$0xff]
    %v82 = vld [vmem:[%s80 + $0x28] sm:$0xff]
    %v83 = vrcp.pop %v73
    %v84 = vrcp.pop %v74
    %v85 = vrcp.pop %v78
    %v86 = vrcp.pop %v79
    %v87 = vsub.f32 %v63, %v65
    %v88 = vsub.f32 %v64, %v66
    %v89 = vand.u32 2147483647, %v87
    %v90 = vand.u32 2147483647, %v88
    %v91 = vsub.f32 0.0, %v89
    %v92 = vsub.f32 0.0, %v90
    %v93 = vmul.f32 %v91, %v83
    %v94 = vmul.f32 %v92, %v84
    %v95 = vmul.f32 %v93, 1.442695
    %v96 = vpow.pop %v95
    %v97 = vmul.f32 %v94, 1.442695
    %v98 = vpow.pop %v97
    %v99 = vmul.f32 %v83, 0.5
    %v100 = vmul.f32 %v84, 0.5
    %v101 = vmul.f32 %v96, %v99
    %v102 = vmul.f32 %v98, %v100
    %v103 = vsub.f32 %v63, %v68
    %v104 = vsub.f32 %v64, %v69
    %v105 = vand.u32 2147483647, %v103
    %v106 = vand.u32 2147483647, %v104
    %v107 = vsub.f32 0.0, %v105
    %v108 = vsub.f32 0.0, %v106
    %v109 = vmul.f32 %v107, %v85
    %v110 = vmul.f32 %v108, %v86
    %v111 = vmul.f32 %v109, 1.442695
    %v112 = vpow.pop %v111
    %v113 = vmul.f32 %v110, 1.442695
    %v114 = vpow.pop %v113
    %v115 = vmul.f32 %v85, 0.5
    %v116 = vmul.f32 %v86, 0.5
    %v117 = vmul.f32 %v112, %v115
    %v118 = vmul.f32 %v114, %v116
    %v119 = vmul.f32 %v81, %v101
    %v120 = vmul.f32 %v82, %v102
    %v121 = vsub.f32 1.0, %v81
    %v122 = vsub.f32 1.0, %v82
    %v123 = vmul.f32 %v121, %v117
    %v124 = vmul.f32 %v122, %v118
    %v125 = vadd.f32 %v119, %v123
    %v126 = vadd.f32 %v120, %v124
    %v127 = vlog2.pop %v125
    %v128 = vmul.f32 %v127, 0.6931472
    %v129 = vlog2.pop %v126
    %v130 = vmul.f32 %v129, 0.6931472
    %v131 = vsub.f32 0.0, %v128
    %v132 = vsub.f32 0.0, %v130
    %vm133 = vcmp.ne.f32.partialorder %v125, %v125
    %vm134 = vcmp.ne.f32.partialorder %v126, %v126
    %vm135 = vmxor %vm133, 1
    %vm136 = vmxor %vm134, 1
    %vm137 = vcmp.ne.f32.partialorder %v131, inf
    %vm138 = vcmp.ne.f32.partialorder %v132, inf
    %vm139 = vmand %vm135, %vm137
    %vm140 = vmand %vm136, %vm138
    %v141 = vsel %vm139, %v131, 0.0
    %v142 = vsel %vm140, %v132, 0.0
    %v143 = vsel %vm139, 1, 0
    %v144 = vsel %vm140, 1, 0
    %v145 = vcvt.s32.f32 %v143
    %v146 = vcvt.s32.f32 %v144
    %v147 = vld [vmem:[#allocation7] sm:$0xff]
    %v148 = vld [vmem:[#allocation7 + $0x8] sm:$0xff]
    %v149 = vadd.f32 %v141, 0.0
    %v150 = vadd.f32 %v142, 0.0
    %v151 = vadd.f32 %v147, %v149
    %v152 = vadd.f32 %v148, %v150
    %153 = vst [vmem:[#allocation7] sm:$0xff] %v151
    %154 = vst [vmem:[#allocation7 + $0x8] sm:$0xff] %v152
    %v155 = vld [vmem:[#allocation8] sm:$0xff]
    %v156 = vld [vmem:[#allocation8 + $0x8] sm:$0xff]
    %v157 = vadd.f32 %v145, 0.0
    %v158 = vadd.f32 %v146, 0.0
    %v159 = vadd.f32 %v155, %v157
    %v160 = vadd.f32 %v156, %v158
    %161 = vst [vmem:[#allocation8] sm:$0xff] %v159
    %162 = vst [vmem:[#allocation8 + $0x8] sm:$0xff] %v160
    // Predicated region
    $region22: #{tpu_custom_call.1} parent=1 // pred_check
      _
    $region23: #{tpu_custom_call.1} parent=1 // pred_check_branch
      %164 = sbr.rel (0) target = $region25
    $region24: #{tpu_custom_call.1} parent=1 // pred_region
      %166 = vsyncadd [#allocation4], 0
      %s167 = sshll.u32 [#allocation7], 4
      %s168 = int_to_ptr.vmem [resolvable:$true] %s167
      %s169 = sshll.u32 %s2, 4
      %s170 = int_to_ptr.hbm [resolvable:$true] %s169
      %175 = dma.vmem_to_hbm [thread:$0]  %s168, 256, %s170, [#allocation4], 128, 128, 8
    $region25: #{tpu_custom_call.1} parent=1 // pred_fallthru
      _
    // Predicated region
    $region26: #{tpu_custom_call.1} parent=1 // pred_check
      _
    $region27: #{tpu_custom_call.1} parent=1 // pred_check_branch
      %177 = sbr.rel (0) target = $region29
    $region28: #{tpu_custom_call.1} parent=1 // pred_region
      %179 = vsyncadd [#allocation9], 0
      %s180 = sshll.u32 [#allocation8], 4
      %s181 = int_to_ptr.vmem [resolvable:$true] %s180
      %s182 = sshll.u32 %s3, 4
      %s183 = int_to_ptr.hbm [resolvable:$true] %s182
      %188 = dma.vmem_to_hbm [thread:$0]  %s181, 256, %s183, [#allocation9], 128, 128, 8
    $region29: #{tpu_custom_call.1} parent=1 // pred_fallthru
      _
    // Predicated region
    $region30: #{tpu_custom_call.1} parent=1 // pred_check
      _
    $region31: #{tpu_custom_call.1} parent=1 // pred_check_branch
      %190 = sbr.rel (0) target = $region33
    $region32: #{tpu_custom_call.1} parent=1 // pred_region
      %192 = dma.done [#allocation4], 256
    $region33: #{tpu_custom_call.1} parent=1 // pred_fallthru
      _
    // Predicated region
    $region34: #{tpu_custom_call.1} parent=1 // pred_check
      _
    $region35: #{tpu_custom_call.1} parent=1 // pred_check_branch
      %194 = sbr.rel (0) target = $region37
    $region36: #{tpu_custom_call.1} parent=1 // pred_region
      %196 = dma.done [#allocation9], 256
    $region37: #{tpu_custom_call.1} parent=1 // pred_fallthru
      _
    %197 = vsyncpa [#allocation3], 1
    %198 = vsyncpa [#allocation6], 1
    %199 = vsyncpa [#allocation4], 1
    %200 = vsyncpa [#allocation9], 1

</llo_original>
